<compile_context>
chip_gen: v6e
topology: v6e:2x2x1
jax: 0.10.0
libtpu: 0.0.40
codegen_flags: <defaults>
</compile_context>

<pallas_src>
import functools
import math

import numpy as np

import jax
import jax.numpy as jnp
from jax import lax
from jax.experimental import pallas as pl
from jax.experimental.pallas import tpu as pltpu


# ------------------------------------------------------------------------- kernels
def _emb_bias_kernel(x_ref, w_ref, bias_ref, o_ref):
    """o = x @ W' + bias'   (posi_emb=False; bias' is a resident (1, width_out) row)."""
    y = jnp.dot(x_ref[...], w_ref[...], preferred_element_type=jnp.float32)
    o_ref[...] = (y + bias_ref[...]).astype(o_ref.dtype)


def _emb_pe_kernel(x_ref, w_ref, bias_ref, freq_ref, slot_ref, phase_ref, o_ref,
                   *, pack):
    """o = x @ W' + bias' + pe, with pe generated in-kernel (no HBM pe stream).

    Packed output column c = slot*d_pad + dm holds feature dm of original position
    pos = packed_row * pack + slot.  Reference table:
        pe[pos, 2k] = sin(pos * f_k),  pe[pos, 2k+1] = cos(pos * f_k) = sin(pos*f_k + pi/2)
    so with per-lane constants freq (f_k), slot and phase (0 or pi/2) a single EUP
    sin per element reproduces it.
    """
    y = jnp.dot(x_ref[...], w_ref[...], preferred_element_type=jnp.float32)
    tile_r = o_ref.shape[0]
    base = pl.program_id(1) * (tile_r * pack)          # first position in this tile
    pos = (lax.broadcasted_iota(jnp.int32, o_ref.shape, 0) * pack + base
           ).astype(jnp.float32) + slot_ref[...]
    pe = jnp.sin(pos * freq_ref[...] + phase_ref[...])
    o_ref[...] = (y + bias_ref[...] + pe).astype(o_ref.dtype)


# --------------------------------------------------------------- packing heuristics
def _choose_packing(d_model, d_in, *, target_lanes=512, max_width=1024, max_k=2048):
    """Pick (P, d_pad): pack P sequence rows into one output row of width P*d_pad
    that is a multiple of 128 lanes (unmasked stores)."""
    g = math.gcd(d_model, 128)
    p0 = 128 // g                           # smallest P with P*d_model % 128 == 0
    if p0 * d_model <= max_width:
        m = max(1, target_lanes // (p0 * d_model))
        m = min(m, max(1, max_k // max(1, p0 * d_in)))   # keep packed K modest
        return p0 * m, d_model              # exact packing, no column padding
    # awkward d_model (>128, not a multiple of 128): pad columns up to a 128 multiple
    d_pad = -(-d_model // 128) * 128
    p = max(1, min(target_lanes // d_pad, max_k // max(1, d_in)))
    return p, d_pad


def _pe_lane_constants(d_model, d_pad, P):
    """Per-output-lane constants (freq, slot, phase), each (1, P*d_pad) float32."""
    # identical frequency computation to make_positional_embedding / the PyTorch ref
    div_term = jnp.exp(jnp.arange(0, d_model, 2, dtype=jnp.float32)
                       * -(math.log(10000.0) / d_model))        # (ceil(d_model/2),)
    dm = np.arange(d_pad)
    k = np.minimum(dm // 2, div_term.shape[0] - 1)
    valid = (dm < d_model).astype(np.float32)
    freq_feat = div_term[k] * valid                             # 0 in padded columns
    phase_feat = jnp.asarray(
        np.where((dm % 2 == 1) & (dm < d_model), math.pi / 2.0, 0.0), jnp.float32)
    freq = jnp.tile(freq_feat, P)[None, :]
    phase = jnp.tile(phase_feat, P)[None, :]
    slot = jnp.asarray(np.repeat(np.arange(P, dtype=np.float32), d_pad))[None, :]
    return freq, slot, phase


def make_positional_embedding(seq_len, d_model, dtype=jnp.float32):
    """Replicates positionalEmbedding's sin/cos table for the first `seq_len` rows."""
    position = jnp.arange(seq_len, dtype=jnp.float32)[:, None]
    div_term = jnp.exp(jnp.arange(0, d_model, 2, dtype=jnp.float32)
                       * -(math.log(10000.0) / d_model))
    ang = position * div_term
    pe = jnp.zeros((seq_len, d_model), jnp.float32)
    pe = pe.at[:, 0::2].set(jnp.sin(ang)[:, : (d_model + 1) // 2])
    pe = pe.at[:, 1::2].set(jnp.cos(ang)[:, : d_model // 2])
    return pe.astype(dtype)


# -------------------------------------------------------------------------- wrapper
def data_embedding(x, weight=None, bias=None, *, value_linear=True,
                   value_sqrt=False, posi_emb=False, out_dtype=jnp.float32,
                   max_tile_rows=2048, vmem_budget_bytes=24 * 1024 * 1024):
    """Fused dataEmbedding forward (inference).

    x      : (B, L, d_input) float32
    weight : (d_input, d_model)   (inputLinear weight stored (in, out))
    bias   : (d_model,)
    out_dtype: pass jnp.bfloat16 when downstream blocks run in bf16 — halves the
               output HBM stream (the matmul still accumulates in f32).
    """
    B, L, d_in = x.shape

    if value_linear:
        d_model = weight.shape[1]
        w_eff = weight.astype(jnp.float32)
        b_eff = (bias if bias is not None
                 else jnp.zeros((d_model,), jnp.float32)).astype(jnp.float32)
    else:
        # valueEmbedding skips the linear: y = x (optionally * sqrt(d_model)).
        d_model = d_in
        w_eff = jnp.eye(d_in, dtype=jnp.float32)
        b_eff = jnp.zeros((d_model,), jnp.float32)

    scale = math.sqrt(d_model) if value_sqrt else 1.0

    # ---- lane packing / column padding -> lane-dense (multiple-of-128) output rows
    P, d_pad = _choose_packing(d_model, d_in)
    width_in, width_out = P * d_in, P * d_pad

    # ---- constant folding:  W' = scale*W (zero-padded cols),  bias' = scale*bias
    if d_pad > d_model:
        w_eff = jnp.concatenate(
            [w_eff, jnp.zeros((d_in, d_pad - d_model), jnp.float32)], axis=1)
        b_eff = jnp.concatenate([b_eff, jnp.zeros((d_pad - d_model,), jnp.float32)])
    w_p = jnp.kron(jnp.eye(P, dtype=jnp.float32), scale * w_eff)   # (P*d_in, P*d_pad)
    bias_p = jnp.tile(scale * b_eff, P)[None, :]                   # (1, P*d_pad)

    # ---- row-tile sizing: big tiles, bounded double-buffered VMEM, megacore-aware
    rows_needed = pl.cdiv(L, P)
    out_bytes = np.dtype(out_dtype).itemsize
    bytes_per_row = 2 * (width_in * 4 + width_out * out_bytes)     # 2x: double buffer
    vmem_cap = max(8, (vmem_budget_bytes // bytes_per_row) // 8 * 8)
    tile_cap = min(max_tile_rows, vmem_cap)
    if B == 1 and rows_needed >= 16:
        # v7x: keep >= 2 row tiles so the "parallel" row axis can split across the
        # two TensorCores, but only if padding waste stays <= ~25%.
        half = (-(-rows_needed // 2) + 7) // 8 * 8
        if 2 * half <= rows_needed + max(8, rows_needed // 4):
            tile_cap = min(tile_cap, half)

    if rows_needed <= tile_cap:
        tile_r = rows_needed            # single row tile: block == full dim
        rows = rows_needed
    else:
        tile_r = tile_cap               # multiple of 8 -> valid sublane tiling
        rows = pl.cdiv(rows_needed, tile_r) * tile_r
    Lp = rows * P

    # ---- pack P rows per output row (pad the sequence only if actually needed)
    x = x.astype(jnp.float32)
    if Lp != L:
        x = jnp.pad(x, ((0, 0), (0, Lp - L), (0, 0)))
    x_p = x.reshape(B, rows, width_in)

    grid = (B, rows // tile_r)
    x_spec = pl.BlockSpec((pl.Squeezed(), tile_r, width_in), lambda b, r: (b, r, 0))
    w_spec = pl.BlockSpec((width_in, width_out), lambda b, r: (0, 0))
    out_spec = pl.BlockSpec((pl.Squeezed(), tile_r, width_out), lambda b, r: (b, r, 0))

    def _row_spec():                    # tiny resident (1, width_out) constant rows
        return pl.BlockSpec((1, width_out), lambda b, r: (0, 0))

    if posi_emb:
        freq, slot, phase = _pe_lane_constants(d_model, d_pad, P)
        kernel = functools.partial(_emb_pe_kernel, pack=P)
        operands = (x_p, w_p, bias_p, freq, slot, phase)
        in_specs = [x_spec, w_spec, _row_spec(), _row_spec(), _row_spec(), _row_spec()]
    else:
        kernel = _emb_bias_kernel
        operands = (x_p, w_p, bias_p)
        in_specs = [x_spec, w_spec, _row_spec()]

    out = pl.pallas_call(
        kernel,
        out_shape=jax.ShapeDtypeStruct((B, rows, width_out), out_dtype),
        grid_spec=pltpu.PrefetchScalarGridSpec(
            num_scalar_prefetch=0,
            grid=grid,
            in_specs=in_specs,
            out_specs=out_spec,
        ),
        compiler_params=pltpu.CompilerParams(
            dimension_semantics=("parallel", "parallel"),
        ),
    )(*operands)

    # Un-pack lanes and strip sequence / column padding (free XLA reshape + slice).
    return out.reshape(B, Lp, d_pad)[:, :L, :d_model]


# ------------------------------------------------------------------------ reference
def reference(x, weight, bias, *, value_linear=True, value_sqrt=False, posi_emb=False):
    if value_linear:
        d_model = weight.shape[1]
        y = jnp.einsum("bld,dm->blm", x, weight) + bias
    else:
        d_model = x.shape[-1]
        y = x
    if value_sqrt:
        y = y * math.sqrt(d_model)
    if posi_emb:
        y = y + make_positional_embedding(x.shape[1], d_model)[None]
    return y


if __name__ == "__main__":
    key = jax.random.PRNGKey(0)
    kx, kw, kb, kx2, kw2, kb2 = jax.random.split(key, 6)

    # --- Configs 1 & 2: small shapes (batch=2, seq=8, d_input=4, d_model=32) -------
    B, L, d_in, d_model = 2, 8, 4, 32
    x = jax.random.normal(kx, (B, L, d_in), dtype=jnp.float32)
    bound = 1.0 / math.sqrt(d_in)
    weight = jax.random.uniform(kw, (d_in, d_model), minval=-bound, maxval=bound,
                                dtype=jnp.float32)
    bias = jax.random.uniform(kb, (d_model,), minval=-bound, maxval=bound,
                              dtype=jnp.float32)

    # Config 1: full-featured path (linear + sqrt scaling + positional embedding).
    out1 = jax.block_until_ready(
        data_embedding(x, weight, bias, value_linear=True, value_sqrt=True,
                       posi_emb=True))
    ref1 = reference(x, weight, bias, value_linear=True, value_sqrt=True,
                     posi_emb=True)
    assert out1.shape == (B, L, d_model)
    assert jnp.allclose(out1, ref1, atol=1e-4, rtol=1e-5)

    # Config 2: LDAformer defaults (value_linear=True, value_sqrt=False, pos_emb=False).
    out2 = jax.block_until_ready(
        data_embedding(x, weight, bias, value_linear=True, value_sqrt=False,
                       posi_emb=False))
    ref2 = reference(x, weight, bias, value_linear=True, value_sqrt=False,
                     posi_emb=False)
    assert jnp.allclose(out2, ref2, atol=1e-4, rtol=1e-5)

    # --- Config 3: exercises the multi-tile grid path + in-kernel pe offsets -------
    # (B=1 longer sequence, LDAformer default d_model=12 -> exact 384-lane packing)
    B3, L3, d_in3, d_model3 = 1, 1024, 4, 12
    x3 = jax.random.normal(kx2, (B3, L3, d_in3), dtype=jnp.float32)
    bound3 = 1.0 / math.sqrt(d_in3)
    w3 = jax.random.uniform(kw2, (d_in3, d_model3), minval=-bound3, maxval=bound3,
                            dtype=jnp.float32)
    b3 = jax.random.uniform(kb2, (d_model3,), minval=-bound3, maxval=bound3,
                            dtype=jnp.float32)
    out3 = jax.block_until_ready(
        data_embedding(x3, w3, b3, value_linear=True, value_sqrt=False,
                       posi_emb=True))
    ref3 = reference(x3, w3, b3, value_linear=True, value_sqrt=False, posi_emb=True)
    assert out3.shape == (B3, L3, d_model3)
    # slightly looser atol: pe is evaluated as sin(angle + pi/2) instead of cos(angle)
    assert jnp.allclose(out3, ref3, atol=5e-4, rtol=1e-5)

    print("KERNEL_OK")
</pallas_src>

<mosaic_0001>
module attributes {stable_mosaic.version = 11 : i64} {
  func.func @_emb_pe_kernel(%arg0: i32, %arg1: i32, %arg2: memref<1x1x64xf32, #tpu.memory_space<vmem>>, %arg3: memref<64x512xf32, #tpu.memory_space<vmem>>, %arg4: memref<1x512xf32, #tpu.memory_space<vmem>>, %arg5: memref<1x512xf32, #tpu.memory_space<vmem>>, %arg6: memref<1x512xf32, #tpu.memory_space<vmem>>, %arg7: memref<1x512xf32, #tpu.memory_space<vmem>>, %arg8: memref<1x1x512xf32, #tpu.memory_space<vmem>>) attributes {dimension_semantics = [#tpu.dimension_semantics<parallel>, #tpu.dimension_semantics<parallel>], iteration_bounds = array<i64: 2, 1>, scalar_prefetch = 0 : i64, scratch_operands = 0 : i64, tpu.core_type = #tpu.core_type<tc>, window_params = [{transform_indices = @transform_0, window_bounds = array<i64: 1, 1, 64>}, {pipeline_mode = #tpu.pipeline_mode<synchronous>, transform_indices = @transform_1, window_bounds = array<i64: 64, 512>}, {pipeline_mode = #tpu.pipeline_mode<synchronous>, transform_indices = @transform_2, window_bounds = array<i64: 1, 512>}, {pipeline_mode = #tpu.pipeline_mode<synchronous>, transform_indices = @transform_3, window_bounds = array<i64: 1, 512>}, {pipeline_mode = #tpu.pipeline_mode<synchronous>, transform_indices = @transform_4, window_bounds = array<i64: 1, 512>}, {pipeline_mode = #tpu.pipeline_mode<synchronous>, transform_indices = @transform_5, window_bounds = array<i64: 1, 512>}, {transform_indices = @transform_6, window_bounds = array<i64: 1, 1, 512>}]} {
    %c0 = arith.constant 0 : index
    %c0_0 = arith.constant 0 : index
    %c0_1 = arith.constant 0 : index
    %0 = vector.load %arg2[%c0, %c0_0, %c0_1] : memref<1x1x64xf32, #tpu.memory_space<vmem>>, vector<1x1x64xf32>
    %1 = vector.shape_cast %0 : vector<1x1x64xf32> to vector<1x64xf32>
    %c0_2 = arith.constant 0 : index
    %c0_3 = arith.constant 0 : index
    %2 = vector.load %arg3[%c0_2, %c0_3] : memref<64x512xf32, #tpu.memory_space<vmem>>, vector<64x512xf32>
    %cst = arith.constant dense<0.000000e+00> : vector<1x512xf32>
    %3 = tpu.matmul %1, %2, %cst {dimension_numbers = #tpu.dot_dimension_numbers<[1], [0], [0], [1], [0, 0, 1, 1], [], []>} : vector<1x64xf32>, vector<64x512xf32>, vector<1x512xf32> -> vector<1x512xf32>
    %c16_i32 = arith.constant 16 : i32
    %4 = arith.muli %arg1, %c16_i32 : i32
    %5 = tpu.iota {dimensions = array<i32: 0>} : vector<1x512xi32>
    %c16_i32_4 = arith.constant 16 : i32
    %6 = vector.broadcast %c16_i32_4 : i32 to vector<1x512xi32>
    %7 = arith.muli %5, %6 : vector<1x512xi32>
    %8 = vector.broadcast %4 : i32 to vector<1x512xi32>
    %9 = arith.addi %7, %8 : vector<1x512xi32>
    %10 = arith.sitofp %9 : vector<1x512xi32> to vector<1x512xf32>
    %c0_5 = arith.constant 0 : index
    %c0_6 = arith.constant 0 : index
    %11 = vector.load %arg6[%c0_5, %c0_6] : memref<1x512xf32, #tpu.memory_space<vmem>>, vector<1x512xf32>
    %12 = arith.addf %10, %11 : vector<1x512xf32>
    %c0_7 = arith.constant 0 : index
    %c0_8 = arith.constant 0 : index
    %13 = vector.load %arg5[%c0_7, %c0_8] : memref<1x512xf32, #tpu.memory_space<vmem>>, vector<1x512xf32>
    %14 = arith.mulf %12, %13 : vector<1x512xf32>
    %c0_9 = arith.constant 0 : index
    %c0_10 = arith.constant 0 : index
    %15 = vector.load %arg7[%c0_9, %c0_10] : memref<1x512xf32, #tpu.memory_space<vmem>>, vector<1x512xf32>
    %16 = arith.addf %14, %15 : vector<1x512xf32>
    %17 = math.sin %16 : vector<1x512xf32>
    %c0_11 = arith.constant 0 : index
    %c0_12 = arith.constant 0 : index
    %18 = vector.load %arg4[%c0_11, %c0_12] : memref<1x512xf32, #tpu.memory_space<vmem>>, vector<1x512xf32>
    %19 = arith.addf %3, %18 : vector<1x512xf32>
    %20 = arith.addf %19, %17 : vector<1x512xf32>
    %c0_13 = arith.constant 0 : index
    %c0_14 = arith.constant 0 : index
    %c0_15 = arith.constant 0 : index
    %21 = vector.load %arg8[%c0_13, %c0_14, %c0_15] : memref<1x1x512xf32, #tpu.memory_space<vmem>>, vector<1x1x512xf32>
    %22 = vector.shape_cast %21 : vector<1x1x512xf32> to vector<1x512xf32>
    %23 = vector.shape_cast %20 : vector<1x512xf32> to vector<1x1x512xf32>
    tpu.vector_store %arg8[%c0_13, %c0_14, %c0_15], %23 {strides = array<i32>} : memref<1x1x512xf32, #tpu.memory_space<vmem>>, vector<1x1x512xf32>,
    return
  }
  func.func @transform_0(%arg0: i32, %arg1: i32) -> (i32, i32, i32) {
    %c0_i32 = arith.constant 0 : i32
    %c0_i32_0 = arith.constant 0 : i32
    return %arg0, %arg1, %c0_i32 : i32, i32, i32
  }
  func.func @transform_1(%arg0: i32, %arg1: i32) -> (i32, i32) {
    %c0_i32 = arith.constant 0 : i32
    %c0_i32_0 = arith.constant 0 : i32
    %c0_i32_1 = arith.constant 0 : i32
    return %c0_i32, %c0_i32_0 : i32, i32
  }
  func.func @transform_2(%arg0: i32, %arg1: i32) -> (i32, i32) {
    %c0_i32 = arith.constant 0 : i32
    %c0_i32_0 = arith.constant 0 : i32
    %c0_i32_1 = arith.constant 0 : i32
    return %c0_i32, %c0_i32_0 : i32, i32
  }
  func.func @transform_3(%arg0: i32, %arg1: i32) -> (i32, i32) {
    %c0_i32 = arith.constant 0 : i32
    %c0_i32_0 = arith.constant 0 : i32
    %c0_i32_1 = arith.constant 0 : i32
    return %c0_i32, %c0_i32_0 : i32, i32
  }
  func.func @transform_4(%arg0: i32, %arg1: i32) -> (i32, i32) {
    %c0_i32 = arith.constant 0 : i32
    %c0_i32_0 = arith.constant 0 : i32
    %c0_i32_1 = arith.constant 0 : i32
    return %c0_i32, %c0_i32_0 : i32, i32
  }
  func.func @transform_5(%arg0: i32, %arg1: i32) -> (i32, i32) {
    %c0_i32 = arith.constant 0 : i32
    %c0_i32_0 = arith.constant 0 : i32
    %c0_i32_1 = arith.constant 0 : i32
    return %c0_i32, %c0_i32_0 : i32, i32
  }
  func.func @transform_6(%arg0: i32, %arg1: i32) -> (i32, i32, i32) {
    %c0_i32 = arith.constant 0 : i32
    %c0_i32_0 = arith.constant 0 : i32
    return %arg0, %arg1, %c0_i32 : i32, i32, i32
  }
}

</mosaic_0001>

<llo_original>
// kernel: tpu_custom_call.1
$region0: #{tpu_custom_call.1}
  #allocation0 [shape = 'u32[]', space=smem, size = 0x4, offset = 0x4, fixed_abs, tag = 'smem constant byte address 0x4 - core index']
  #allocation1 [shape = 'u32[144,128]{1,0:T(1,128)}', space=vmem, size = 0x12000, scoped, tag = 'internal scratch']
  %s0 = inlined_call_operand.hbm [shape: f32[2,1,64], index: 0, kind: input, shape index: {}]
  %s1 = inlined_call_operand.hbm [shape: f32[64,512], index: 1, kind: input, shape index: {}]
  %s2 = inlined_call_operand.hbm [shape: f32[1,512], index: 2, kind: input, shape index: {}]
  %s3 = inlined_call_operand.vmem [shape: f32[1,512], index: 3, kind: input, shape index: {}]
  %s4 = inlined_call_operand.hbm [shape: f32[1,512], index: 4, kind: input, shape index: {}]
  %s5 = inlined_call_operand.vmem [shape: f32[1,512], index: 5, kind: input, shape index: {}]
  %s6 = inlined_call_operand.hbm [shape: f32[2,1,512], index: 6, kind: output, shape index: {}]
  %s7 = sld [smem:[#allocation0]]
  $region73: #{tpu_custom_call.1} parent=0
    _
  %s9 = ssub.s32 1, %s7
  %s10 = scalar_select 0, %s9, %s7
  $region1: #{tpu_custom_call.1} parent=0
    #allocation2 [shape = 'u8[1024]{0}', space=vmem, size = 0x400, scoped, tag = 'input window, operand 0']
    #allocation3 [shape = 's32[2]{0}', space=sflag, size = 0x8, scoped, tag = 'scoped memory for tpu_custom_call.1']
    #allocation4 [shape = 's32[2]{0}', space=sflag, size = 0x8, scoped, tag = 'scoped memory for tpu_custom_call.1']
    #allocation5 [shape = 'u8[131072]{0}', space=vmem, size = 0x20000, scoped, tag = 'input window, operand 1, single buffered']
    #allocation6 [shape = 's32[1]{0}', space=sflag, size = 0x4, scoped, tag = 'scoped memory for tpu_custom_call.1']
    #allocation7 [shape = 'u8[2048]{0}', space=vmem, size = 0x800, scoped, tag = 'input window, operand 2, single buffered']
    #allocation8 [shape = 'u8[2048]{0}', space=vmem, size = 0x800, scoped, tag = 'input window, operand 4, single buffered']
    #allocation9 [shape = 's32[1]{0}', space=sflag, size = 0x4, scoped, tag = 'scoped memory for tpu_custom_call.1']
    #allocation10 [shape = 'u8[4096]{0}', space=vmem, size = 0x1000, scoped, tag = 'output window, operand 0']
    %11 = vsyncpa [#allocation3], 0
    %s12 = scalar_lea.sflag [#allocation3], 1
    %13 = vsyncpa %s12, 0
    %14 = vsyncpa [#allocation6], 0
    %15 = vsyncpa [#allocation9], 0
    %16 = vsyncpa [#allocation4], 0
    %s17 = scalar_lea.sflag [#allocation4], 1
    %18 = vsyncpa %s17, 0
    loop: start=0, step=1, limit=4
    $region2: #{tpu_custom_call.1} parent=1 // loop_pre_header
      _
    $region3: #{tpu_custom_call.1} parent=1 // loop_header
      %s20 = sphi 0, %s24
      %p21 = scmp.ge.s32.totalorder %s20, 4
      %s27 = sphi 0, %s39
      %s28 = sphi 0, %s35
      %s29 = sphi 0, %s27
      %s30 = sphi 0, %s28
      %s31 = sphi 0, %s29
      %s32 = sphi 0, %s30
      %s44 = sphi 0, %s46
      %s47 = sphi 0, %s44
      %s48 = sphi 0, %s47
      %s64 = sphi 0, %s48
      %s68 = sphi 0, %s68
      %s70 = sphi 0, %s68
      %s71 = sphi 0, %s70
      %s85 = sphi 0, %s71
      %s89 = sphi 0, %s89
      %s91 = sphi 0, %s89
      %s92 = sphi 0, %s91
      %s106 = sphi 0, %s92
      %s110 = sphi 0, %s110
      %s112 = sphi 0, %s110
      %s113 = sphi 0, %s112
      %s127 = sphi 0, %s113
      %s131 = sphi 0, %s131
      %s133 = sphi 0, %s131
      %s134 = sphi 0, %s133
      %s148 = sphi 0, %s134
      %s152 = sphi 0, %s152
      %s154 = sphi 0, %s152
      %s155 = sphi 0, %s154
      %s169 = sphi 0, %s155
      %s177 = sphi 0, %s179
      %s180 = sphi 0, %s177
      %s181 = sphi 0, %s180
      %s197 = sphi 0, %s181
    $region4: #{tpu_custom_call.1} parent=1 // loop_header_branch
      %23 = sbr.rel (%p21) target = $region8
    $region5: #{tpu_custom_call.1} parent=1 // loop_body
      %s25 = ssub.s32 %s20, 1
      %s26 = ssub.s32 %s20, 2
      %s33 = sadd.s32 1, %s28
      %p34 = scmp.ge.s32.totalorder %s33, 1
      %s35 = scalar_select %p34, 0, %s33
      %s36 = sadd.s32 1, %s27
      %s37 = scalar_select %p34, %s36, %s27
      %p38 = scmp.ge.s32.totalorder %s37, 2
      %s39 = scalar_select %p38, 0, %s37
      %s40 = ssub.s32 %s27, %s39
      %s41 = ssub.s32 %s28, %s35
      %s42 = sor.u32 %s40, %s41
      %p43 = scmp.eq.s32.totalorder %s42, 0
      %s45 = sadd.s32 %s44, 1
      %s46 = scalar_select %p43, %s44, %s45
      %p49 = pneg %p43
      %p50 = scmp.eq.s32.totalorder %s20, 1
      %p51 = por %p49, %p50
      %p52 = scmp.ne.s32.totalorder %s44, %s47
      %p53 = scmp.eq.s32.totalorder %s20, 0
      %p54 = por %p52, %p53
      %p55 = scmp.ne.s32.totalorder %s44, %s47
      %p56 = scmp.eq.s32.totalorder %s25, 1
      %p57 = por %p55, %p56
      %p58 = scmp.ne.s32.totalorder %s47, %s48
      %p59 = scmp.eq.s32.totalorder %s25, 0
      %p60 = por %p58, %p59
      %p61 = scmp.ne.s32.totalorder %s47, %s48
      %p62 = scmp.eq.s32.totalorder %s26, 1
      %p63 = por %p61, %p62
      %p65 = scmp.ne.s32.totalorder %s48, %s64
      %p66 = scmp.eq.s32.totalorder %s26, 0
      %p67 = por %p65, %p66
      %s69 = sadd.s32 %s68, 1
      %p72 = scmp.eq.s32.totalorder %s20, 1
      %p73 = scmp.ne.s32.totalorder %s68, %s70
      %p74 = scmp.eq.s32.totalorder %s20, 0
      %p75 = por %p73, %p74
      %p76 = scmp.ne.s32.totalorder %s68, %s70
      %p77 = scmp.eq.s32.totalorder %s25, 1
      %p78 = por %p76, %p77
      %p79 = scmp.ne.s32.totalorder %s70, %s71
      %p80 = scmp.eq.s32.totalorder %s25, 0
      %p81 = por %p79, %p80
      %p82 = scmp.ne.s32.totalorder %s70, %s71
      %p83 = scmp.eq.s32.totalorder %s26, 1
      %p84 = por %p82, %p83
      %p86 = scmp.ne.s32.totalorder %s71, %s85
      %p87 = scmp.eq.s32.totalorder %s26, 0
      %p88 = por %p86, %p87
      %s90 = sadd.s32 %s89, 1
      %p93 = scmp.eq.s32.totalorder %s20, 1
      %p94 = scmp.ne.s32.totalorder %s89, %s91
      %p95 = scmp.eq.s32.totalorder %s20, 0
      %p96 = por %p94, %p95
      %p97 = scmp.ne.s32.totalorder %s89, %s91
      %p98 = scmp.eq.s32.totalorder %s25, 1
      %p99 = por %p97, %p98
      %p100 = scmp.ne.s32.totalorder %s91, %s92
      %p101 = scmp.eq.s32.totalorder %s25, 0
      %p102 = por %p100, %p101
      %p103 = scmp.ne.s32.totalorder %s91, %s92
      %p104 = scmp.eq.s32.totalorder %s26, 1
      %p105 = por %p103, %p104
      %p107 = scmp.ne.s32.totalorder %s92, %s106
      %p108 = scmp.eq.s32.totalorder %s26, 0
      %p109 = por %p107, %p108
      %s111 = sadd.s32 %s110, 1
      %p114 = scmp.eq.s32.totalorder %s20, 1
      %p115 = scmp.ne.s32.totalorder %s110, %s112
      %p116 = scmp.eq.s32.totalorder %s20, 0
      %p117 = por %p115, %p116
      %p118 = scmp.ne.s32.totalorder %s110, %s112
      %p119 = scmp.eq.s32.totalorder %s25, 1
      %p120 = por %p118, %p119
      %p121 = scmp.ne.s32.totalorder %s112, %s113
      %p122 = scmp.eq.s32.totalorder %s25, 0
      %p123 = por %p121, %p122
      %p124 = scmp.ne.s32.totalorder %s112, %s113
      %p125 = scmp.eq.s32.totalorder %s26, 1
      %p126 = por %p124, %p125
      %p128 = scmp.ne.s32.totalorder %s113, %s127
      %p129 = scmp.eq.s32.totalorder %s26, 0
      %p130 = por %p128, %p129
      %s132 = sadd.s32 %s131, 1
      %p135 = scmp.eq.s32.totalorder %s20, 1
      %p136 = scmp.ne.s32.totalorder %s131, %s133
      %p137 = scmp.eq.s32.totalorder %s20, 0
      %p138 = por %p136, %p137
      %p139 = scmp.ne.s32.totalorder %s131, %s133
      %p140 = scmp.eq.s32.totalorder %s25, 1
      %p141 = por %p139, %p140
      %p142 = scmp.ne.s32.totalorder %s133, %s134
      %p143 = scmp.eq.s32.totalorder %s25, 0
      %p144 = por %p142, %p143
      %p145 = scmp.ne.s32.totalorder %s133, %s134
      %p146 = scmp.eq.s32.totalorder %s26, 1
      %p147 = por %p145, %p146
      %p149 = scmp.ne.s32.totalorder %s134, %s148
      %p150 = scmp.eq.s32.totalorder %s26, 0
      %p151 = por %p149, %p150
      %s153 = sadd.s32 %s152, 1
      %p156 = scmp.eq.s32.totalorder %s20, 1
      %p157 = scmp.ne.s32.totalorder %s152, %s154
      %p158 = scmp.eq.s32.totalorder %s20, 0
      %p159 = por %p157, %p158
      %p160 = scmp.ne.s32.totalorder %s152, %s154
      %p161 = scmp.eq.s32.totalorder %s25, 1
      %p162 = por %p160, %p161
      %p163 = scmp.ne.s32.totalorder %s154, %s155
      %p164 = scmp.eq.s32.totalorder %s25, 0
      %p165 = por %p163, %p164
      %p166 = scmp.ne.s32.totalorder %s154, %s155
      %p167 = scmp.eq.s32.totalorder %s26, 1
      %p168 = por %p166, %p167
      %p170 = scmp.ne.s32.totalorder %s155, %s169
      %p171 = scmp.eq.s32.totalorder %s26, 0
      %p172 = por %p170, %p171
      %s173 = ssub.s32 %s27, %s39
      %s174 = ssub.s32 %s28, %s35
      %s175 = sor.u32 %s173, %s174
      %p176 = scmp.eq.s32.totalorder %s175, 0
      %s178 = sadd.s32 %s177, 1
      %s179 = scalar_select %p176, %s177, %s178
      %p182 = pneg %p176
      %p183 = scmp.eq.s32.totalorder %s20, 1
      %p184 = por %p182, %p183
      %p185 = scmp.ne.s32.totalorder %s177, %s180
      %p186 = scmp.eq.s32.totalorder %s20, 0
      %p187 = por %p185, %p186
      %p188 = scmp.ne.s32.totalorder %s177, %s180
      %p189 = scmp.eq.s32.totalorder %s25, 1
      %p190 = por %p188, %p189
      %p191 = scmp.ne.s32.totalorder %s180, %s181
      %p192 = scmp.eq.s32.totalorder %s25, 0
      %p193 = por %p191, %p192
      %p194 = scmp.ne.s32.totalorder %s180, %s181
      %p195 = scmp.eq.s32.totalorder %s26, 1
      %p196 = por %p194, %p195
      %p198 = scmp.ne.s32.totalorder %s181, %s197
      %p199 = scmp.eq.s32.totalorder %s26, 0
      %p200 = por %p198, %p199
      %p201 = scmp.le.s32.totalorder 1, %s20
      %p202 = scmp.lt.s32.totalorder %s20, 3
      %p203 = pnand %p201, %p202
      %p204 = pneg %p203
      // Predicated region
      $region9: #{tpu_custom_call.1} parent=5 // pred_check
        _
      $region10: #{tpu_custom_call.1} parent=5 // pred_check_branch
        %206 = sbr.rel (%p203) target = $region12
      $region11: #{tpu_custom_call.1} parent=5 // pred_region
        %s207 = ssub.s32 %s20, 1
        // Predicated region
        $region13: #{tpu_custom_call.1} parent=11 // pred_check
          %p208 = pneg %p81
        $region14: #{tpu_custom_call.1} parent=11 // pred_check_branch
          %210 = sbr.rel (%p208) target = $region16
        $region15: #{tpu_custom_call.1} parent=11 // pred_region
          %s212 = ssub.s32 4096, 4096
          %213 = vsyncadd [#allocation6], %s212
          %s214 = sshll.u32 [#allocation5], 4
          %s215 = int_to_ptr.vmem [resolvable:$true] %s214
          %220 = dma.hbm_to_vmem [thread:$0]  %s1, 4096, %s215, [#allocation6], 512, 512, 32
        $region16: #{tpu_custom_call.1} parent=11 // pred_fallthru
          _
        // Predicated region
        $region17: #{tpu_custom_call.1} parent=11 // pred_check
          %p221 = pneg %p102
        $region18: #{tpu_custom_call.1} parent=11 // pred_check_branch
          %223 = sbr.rel (%p221) target = $region20
        $region19: #{tpu_custom_call.1} parent=11 // pred_region
          %s225 = ssub.s32 64, 64
          %226 = vsyncadd [#allocation6], %s225
          %s228 = sshll.u32 [#allocation7], 4
          %s229 = int_to_ptr.vmem [resolvable:$true] %s228
          %231 = dma.hbm_to_vmem [thread:$0]  %s2, 64, %s229, [#allocation6]
        $region20: #{tpu_custom_call.1} parent=11 // pred_fallthru
          _
        // Predicated region
        $region21: #{tpu_custom_call.1} parent=11 // pred_check
          %p232 = pneg %p123
        $region22: #{tpu_custom_call.1} parent=11 // pred_check_branch
          %234 = sbr.rel (%p232) target = $region24
        $region23: #{tpu_custom_call.1} parent=11 // pred_region
          _
        $region24: #{tpu_custom_call.1} parent=11 // pred_fallthru
          _
        // Predicated region
        $region25: #{tpu_custom_call.1} parent=11 // pred_check
          %p235 = pneg %p144
        $region26: #{tpu_custom_call.1} parent=11 // pred_check_branch
          %237 = sbr.rel (%p235) target = $region28
        $region27: #{tpu_custom_call.1} parent=11 // pred_region
          %s239 = ssub.s32 64, 64
          %240 = vsyncadd [#allocation9], %s239
          %s242 = sshll.u32 [#allocation8], 4
          %s243 = int_to_ptr.vmem [resolvable:$true] %s242
          %245 = dma.hbm_to_vmem [thread:$0]  %s4, 64, %s243, [#allocation9]
        $region28: #{tpu_custom_call.1} parent=11 // pred_fallthru
          _
        // Predicated region
        $region29: #{tpu_custom_call.1} parent=11 // pred_check
          %p246 = pneg %p165
        $region30: #{tpu_custom_call.1} parent=11 // pred_check_branch
          %248 = sbr.rel (%p246) target = $region32
        $region31: #{tpu_custom_call.1} parent=11 // pred_region
          _
        $region32: #{tpu_custom_call.1} parent=11 // pred_fallthru
          _
      $region12: #{tpu_custom_call.1} parent=5 // pred_fallthru
        _
      %p249 = scmp.lt.s32.totalorder %s20, 2
      // Predicated region
      $region33: #{tpu_custom_call.1} parent=5 // pred_check
        %p250 = pneg %p249
      $region34: #{tpu_custom_call.1} parent=5 // pred_check_branch
        %252 = sbr.rel (%p250) target = $region36
      $region35: #{tpu_custom_call.1} parent=5 // pred_region
        // Predicated region
        $region37: #{tpu_custom_call.1} parent=35 // pred_check
          %p253 = pneg %p54
        $region38: #{tpu_custom_call.1} parent=35 // pred_check_branch
          %255 = sbr.rel (%p253) target = $region40
        $region39: #{tpu_custom_call.1} parent=35 // pred_region
          %s256 = sand.u32 %s44, 1
          %s257 = scalar_lea.sflag [#allocation3], %s256
          %s258 = sand.u32 %s44, 1
          %s259 = scalar_lea.vmem [#allocation2], %s258
          %s261 = ssub.s32 16, 16
          %262 = vsyncadd %s257, %s261
          %s263 = sadd.s32 %s28, %s27
          %s264 = smul.addr %s263, 16
          %s265 = scalar_lea.hbm %s0, %s264
          %s267 = sshll.u32 %s259, 4
          %s268 = int_to_ptr.vmem [resolvable:$true] %s267
          %270 = dma.hbm_to_vmem [thread:$0]  %s265, 16, %s268, %s257
        $region40: #{tpu_custom_call.1} parent=35 // pred_fallthru
          _
      $region36: #{tpu_custom_call.1} parent=5 // pred_fallthru
        _
      %p271 = scmp.le.s32.totalorder 1, %s20
      %p272 = scmp.lt.s32.totalorder %s20, 3
      %p273 = pnand %p271, %p272
      %p274 = pneg %p273
      // Predicated region
      $region41: #{tpu_custom_call.1} parent=5 // pred_check
        _
      $region42: #{tpu_custom_call.1} parent=5 // pred_check_branch
        %276 = sbr.rel (%p273) target = $region44
      $region43: #{tpu_custom_call.1} parent=5 // pred_region
        %s277 = ssub.s32 %s20, 1
        %s278 = sand.u32 %s47, 1
        %s279 = scalar_lea.sflag [#allocation3], %s278
        %s280 = sand.u32 %s47, 1
        %s281 = scalar_lea.vmem [#allocation2], %s280
        // Predicated region
        $region45: #{tpu_custom_call.1} parent=43 // pred_check
          %p282 = pneg %p60
        $region46: #{tpu_custom_call.1} parent=43 // pred_check_branch
          %284 = sbr.rel (%p282) target = $region48
        $region47: #{tpu_custom_call.1} parent=43 // pred_region
          %285 = dma.done %s279, 16
        $region48: #{tpu_custom_call.1} parent=43 // pred_fallthru
          _
        // Predicated region
        $region49: #{tpu_custom_call.1} parent=43 // pred_check
          %p286 = pneg %p81
        $region50: #{tpu_custom_call.1} parent=43 // pred_check_branch
          %288 = sbr.rel (%p286) target = $region52
        $region51: #{tpu_custom_call.1} parent=43 // pred_region
          %289 = dma.done [#allocation6], 4096
        $region52: #{tpu_custom_call.1} parent=43 // pred_fallthru
          _
        // Predicated region
        $region53: #{tpu_custom_call.1} parent=43 // pred_check
          %p290 = pneg %p102
        $region54: #{tpu_custom_call.1} parent=43 // pred_check_branch
          %292 = sbr.rel (%p290) target = $region56
        $region55: #{tpu_custom_call.1} parent=43 // pred_region
          %293 = dma.done [#allocation6], 64
        $region56: #{tpu_custom_call.1} parent=43 // pred_fallthru
          _
        // Predicated region
        $region57: #{tpu_custom_call.1} parent=43 // pred_check
          %p294 = pneg %p144
        $region58: #{tpu_custom_call.1} parent=43 // pred_check_branch
          %296 = sbr.rel (%p294) target = $region60
        $region59: #{tpu_custom_call.1} parent=43 // pred_region
          %297 = dma.done [#allocation9], 64
        $region60: #{tpu_custom_call.1} parent=43 // pred_fallthru
          _
        %s298 = sand.u32 %s47, 1
        %s299 = scalar_lea.sflag [#allocation3], %s298
        %s300 = sand.u32 %s47, 1
        %s301 = scalar_lea.vmem [#allocation2], %s300
        %p302 = pneg %p60
        %p303 = pneg %p57
        %p304 = pneg %p81
        %p305 = pneg %p78
        %p306 = pneg %p102
        %p307 = pneg %p99
        %p308 = pneg %p123
        %p309 = pneg %p120
        %p310 = pneg %p144
        %p311 = pneg %p141
        %p312 = pneg %p165
        %p313 = pneg %p162
        %p314 = pneg %p193
        %p315 = pneg %p190
        %s316 = sand.u32 %s180, 1
        %s317 = scalar_lea.sflag [#allocation4], %s316
        %s318 = sand.u32 %s180, 1
        %s319 = smul.addr %s318, 4
        %s320 = scalar_lea.vmem [#allocation10], %s319
        %v321 = vld [vmem:[%s281] sm:$0x1]
        %v322 = vld [vmem:[#allocation5] sm:$0xff]
        %v323 = vld [vmem:[#allocation5 + $0x8] sm:$0xff]
        %v324 = vld [vmem:[#allocation5 + $0x10] sm:$0xff]
        %v325 = vld [vmem:[#allocation5 + $0x18] sm:$0xff]
        %v326 = vld [vmem:[#allocation5 + $0x20] sm:$0xff]
        %v327 = vld [vmem:[#allocation5 + $0x28] sm:$0xff]
        %v328 = vld [vmem:[#allocation5 + $0x30] sm:$0xff]
        %v329 = vld [vmem:[#allocation5 + $0x38] sm:$0xff]
        %v330 = vld [vmem:[#allocation5 + $0x40] sm:$0xff]
        %v331 = vld [vmem:[#allocation5 + $0x48] sm:$0xff]
        %v332 = vld [vmem:[#allocation5 + $0x50] sm:$0xff]
        %v333 = vld [vmem:[#allocation5 + $0x58] sm:$0xff]
        %v334 = vld [vmem:[#allocation5 + $0x60] sm:$0xff]
        %v335 = vld [vmem:[#allocation5 + $0x68] sm:$0xff]
        %v336 = vld [vmem:[#allocation5 + $0x70] sm:$0xff]
        %v337 = vld [vmem:[#allocation5 + $0x78] sm:$0xff]
        %v338 = vld [vmem:[#allocation5 + $0x80] sm:$0xff]
        %v339 = vld [vmem:[#allocation5 + $0x88] sm:$0xff]
        %v340 = vld [vmem:[#allocation5 + $0x90] sm:$0xff]
        %v341 = vld [vmem:[#allocation5 + $0x98] sm:$0xff]
        %v342 = vld [vmem:[#allocation5 + $0xa0] sm:$0xff]
        %v343 = vld [vmem:[#allocation5 + $0xa8] sm:$0xff]
        %v344 = vld [vmem:[#allocation5 + $0xb0] sm:$0xff]
        %v345 = vld [vmem:[#allocation5 + $0xb8] sm:$0xff]
        %v346 = vld [vmem:[#allocation5 + $0xc0] sm:$0xff]
        %v347 = vld [vmem:[#allocation5 + $0xc8] sm:$0xff]
        %v348 = vld [vmem:[#allocation5 + $0xd0] sm:$0xff]
        %v349 = vld [vmem:[#allocation5 + $0xd8] sm:$0xff]
        %v350 = vld [vmem:[#allocation5 + $0xe0] sm:$0xff]
        %v351 = vld [vmem:[#allocation5 + $0xe8] sm:$0xff]
        %v352 = vld [vmem:[#allocation5 + $0xf0] sm:$0xff]
        %v353 = vld [vmem:[#allocation5 + $0xf8] sm:$0xff]
        %s354 = smul.u32 %s30, 16
        %v355 = vlaneseq
        %v356 = vshrl.u32 %v355, 7
        %v357 = vmul.u32 %v356, 16
        %v358 = vstv %s354
        %v359 = vadd.s32 %v357, %v358
        %v360 = vcvt.s32.f32 %v359
        %v361 = vld [vmem:[#allocation8] sm:$0xf]
        %v363 = vlaneseq
        %v364 = vshrl.u32 %v363, 7
        %v365 = vsub.s32 0, %v364
        %v366 = vrot.slane %v361, %v365
        %v367 = vlaneseq
        %v368 = vshrl.u32 %v367, 7
        %v369 = vsub.s32 1, %v368
        %v370 = vrot.slane %v361, %v369
        %v371 = vlaneseq
        %v372 = vshrl.u32 %v371, 7
        %v373 = vsub.s32 2, %v372
        %v374 = vrot.slane %v361, %v373
        %v375 = vlaneseq
        %v376 = vshrl.u32 %v375, 7
        %v377 = vsub.s32 3, %v376
        %v378 = vrot.slane %v361, %v377
        %v383 = vadd.f32 %v360, %v366
        %v384 = vadd.f32 %v360, %v370
        %v385 = vadd.f32 %v360, %v374
        %v386 = vadd.f32 %v360, %v378
        %v387 = vld [vmem:[%s3] sm:$0xf]
        %v389 = vlaneseq
        %v390 = vshrl.u32 %v389, 7
        %v391 = vsub.s32 0, %v390
        %v392 = vrot.slane %v387, %v391
        %v393 = vlaneseq
        %v394 = vshrl.u32 %v393, 7
        %v395 = vsub.s32 1, %v394
        %v396 = vrot.slane %v387, %v395
        %v397 = vlaneseq
        %v398 = vshrl.u32 %v397, 7
        %v399 = vsub.s32 2, %v398
        %v400 = vrot.slane %v387, %v399
        %v401 = vlaneseq
        %v402 = vshrl.u32 %v401, 7
        %v403 = vsub.s32 3, %v402
        %v404 = vrot.slane %v387, %v403
        %v409 = vmul.f32 %v383, %v392
        %v410 = vmul.f32 %v384, %v396
        %v411 = vmul.f32 %v385, %v400
        %v412 = vmul.f32 %v386, %v404
        %v413 = vld [vmem:[%s5] sm:$0xf]
        %v415 = vlaneseq
        %v416 = vshrl.u32 %v415, 7
        %v417 = vsub.s32 0, %v416
        %v418 = vrot.slane %v413, %v417
        %v419 = vlaneseq
        %v420 = vshrl.u32 %v419, 7
        %v421 = vsub.s32 1, %v420
        %v422 = vrot.slane %v413, %v421
        %v423 = vlaneseq
        %v424 = vshrl.u32 %v423, 7
        %v425 = vsub.s32 2, %v424
        %v426 = vrot.slane %v413, %v425
        %v427 = vlaneseq
        %v428 = vshrl.u32 %v427, 7
        %v429 = vsub.s32 3, %v428
        %v430 = vrot.slane %v413, %v429
        %v435 = vadd.f32 %v409, %v418
        %v436 = vadd.f32 %v410, %v422
        %v437 = vadd.f32 %v411, %v426
        %v438 = vadd.f32 %v412, %v430
        %v439 = vand.u32 2147483647, %v435
        %vm440 = vcmp.le.f32.partialorder %v439, 0.7853982
        %vm441 = vcmp.lt.s32.totalorder %v435, 0
        %v442 = vand.u32 %v435, 2139095040
        %v443 = vshrl.u32 %v442, 23
        %v444 = vsub.s32 %v443, 127
        %v445 = vand.u32 2147483647, %v435
        %v446 = vand.u32 %v445, 8388607
        %v447 = vor.u32 %v446, 8388608
        %v448 = vsub.s32 0, %v447
        %v449 = vadd.s32 %v444, 1
        %vm450 = vcmp.gt.s32.totalorder %v449, 0
        %v451 = vsel %vm450, %v449, 0
        %v452 = vshrl.u32 %v451, 5
        %v453 = vand.u32 %v451, 31
        %v454 = vsub.s32 32, %v453
        %v455 = vshrl.u32 683565275, %v454
        %v456 = vshll.u32 683565275, %v453
        %v457 = vshrl.u32 2475754826, %v454
        %v458 = vor.u32 %v456, %v457
        %v459 = vshll.u32 2475754826, %v453
        %v460 = vshrl.u32 2131351028, %v454
        %v461 = vor.u32 %v459, %v460
        %v462 = vshll.u32 2131351028, %v453
        %v463 = vshrl.u32 2102212464, %v454
        %v464 = vor.u32 %v462, %v463
        %v465 = vshll.u32 2102212464, %v453
        %v466 = vshrl.u32 920167782, %v454
        %v467 = vor.u32 %v465, %v466
        %v468 = vshll.u32 920167782, %v453
        %v469 = vshrl.u32 1326507024, %v454
        %v470 = vor.u32 %v468, %v469
        %vm471 = vcmp.lt.s32.totalorder %v452, 1
        %vm472 = vcmp.lt.s32.totalorder %v452, 2
        %vm473 = vcmp.lt.s32.totalorder %v452, 3
        %vm474 = vcmp.lt.s32.totalorder %v452, 4
        %v475 = vsel %vm471, %v455, %v458
        %v476 = vsel %vm474, %v464, 2102212464
        %v477 = vsel %vm473, %v461, %v476
        %v478 = vsel %vm472, %v475, %v477
        %v479 = vsel %vm471, %v458, %v461
        %v480 = vsel %vm474, %v467, 920167782
        %v481 = vsel %vm473, %v464, %v480
        %v482 = vsel %vm472, %v479, %v481
        %v483 = vsel %vm471, %v461, %v464
        %v484 = vsel %vm474, %v470, 1326507024
        %v485 = vsel %vm473, %v467, %v484
        %v486 = vsel %vm472, %v483, %v485
        %v487 = vshll.u32 %v447, 8
        %v488 = vmul.u32.u64.compose %v487, %v486
        %v489 = vextract.low.u32 %v488
        %v490 = vextract.high.u32 %v488
        %v491 = vmul.u32.u64.compose %v487, %v482
        %v492 = vextract.low.u32 %v491
        %v493 = vextract.high.u32 %v491
        %v494 = vmul.u32 %v487, %v478
        %v495 = vadd.s32 %v490, %v492
        %vm496 = vc.u32 %v490, %v492
        %v497 = vadd.s32 %v493, 1
        %v498 = vsel %vm496, %v497, %v493
        %v499 = vadd.s32 %v494, %v498
        %v500 = vadd.s32 %v499, 536870912
        %v501 = vshrl.u32 %v500, 30
        %v502 = vshll.u32 %v501, 30
        %v503 = vsub.s32 %v499, %v502
        %vm504 = vcmp.lt.s32.totalorder %v503, 0
        %v505 = vsub.s32 0, %v503
        %v506 = vsel %vm504, %v505, %v503
        %v507 = vclz %v506
        %v508 = vsub.s32 %v507, 2
        %vm509 = vcmp.gt.s32.totalorder 0, %v508
        %v510 = vsel %vm509, 0, %v508
        %v511 = vsub.s32 32, %v510
        %v512 = vshll.u32 %v503, %v510
        %v513 = vshrl.u32 %v495, %v511
        %v514 = vor.u32 %v512, %v513
        %v515 = vsub.s32 4294967266, %v510
        %v516 = vadd.s32 %v515, 127
        %v517 = vshll.u32 %v516, 23
        %v518 = vor.u32 4788187, %v517
        %v519 = vand.u32 2147483647, %v518
        %v521 = vcvt.s32.f32 %v514
        %v522 = vmul.f32 %v521, %v519
        %v523 = vxor.u32 %v522, 2147483648
        %v524 = vsel %vm441, %v523, %v522
        %v525 = vsub.s32 4, %v501
        %v526 = vsel %vm441, %v525, %v501
        %v527 = vsel %vm440, %v435, %v524
        %v528 = vsel %vm440, 0, %v526
        %v529 = vcosq.f32.pop %v527
        %v530 = vsinq.f32.pop %v527
        %vm531 = vweird.f32 %v435
        %v532 = vadd.s32 %v528, 3
        %v533 = vand.u32 %v532, 3
        %vm534 = vcmp.lt.s32.totalorder %v533, 2
        %vm535 = vcmp.eq.s32.totalorder %v533, 0
        %v536 = vxor.u32 %v530, 2147483648
        %v537 = vsel %vm535, %v529, %v536
        %vm538 = vcmp.eq.s32.totalorder %v533, 2
        %v539 = vxor.u32 %v529, 2147483648
        %v540 = vsel %vm538, %v539, %v530
        %v541 = vsel %vm534, %v537, %v540
        %v542 = vsel %vm531, nan, %v541
        %v543 = vand.u32 2147483647, %v436
        %vm544 = vcmp.le.f32.partialorder %v543, 0.7853982
        %vm545 = vcmp.lt.s32.totalorder %v436, 0
        %v546 = vand.u32 %v436, 2139095040
        %v547 = vshrl.u32 %v546, 23
        %v548 = vsub.s32 %v547, 127
        %v549 = vand.u32 2147483647, %v436
        %v550 = vand.u32 %v549, 8388607
        %v551 = vor.u32 %v550, 8388608
        %v552 = vsub.s32 0, %v551
        %v553 = vadd.s32 %v548, 1
        %vm554 = vcmp.gt.s32.totalorder %v553, 0
        %v555 = vsel %vm554, %v553, 0
        %v556 = vshrl.u32 %v555, 5
        %v557 = vand.u32 %v555, 31
        %v558 = vsub.s32 32, %v557
        %v559 = vshrl.u32 683565275, %v558
        %v560 = vshll.u32 683565275, %v557
        %v561 = vshrl.u32 2475754826, %v558
        %v562 = vor.u32 %v560, %v561
        %v563 = vshll.u32 2475754826, %v557
        %v564 = vshrl.u32 2131351028, %v558
        %v565 = vor.u32 %v563, %v564
        %v566 = vshll.u32 2131351028, %v557
        %v567 = vshrl.u32 2102212464, %v558
        %v568 = vor.u32 %v566, %v567
        %v569 = vshll.u32 2102212464, %v557
        %v570 = vshrl.u32 920167782, %v558
        %v571 = vor.u32 %v569, %v570
        %v572 = vshll.u32 920167782, %v557
        %v573 = vshrl.u32 1326507024, %v558
        %v574 = vor.u32 %v572, %v573
        %vm575 = vcmp.lt.s32.totalorder %v556, 1
        %vm576 = vcmp.lt.s32.totalorder %v556, 2
        %vm577 = vcmp.lt.s32.totalorder %v556, 3
        %vm578 = vcmp.lt.s32.totalorder %v556, 4
        %v579 = vsel %vm575, %v559, %v562
        %v580 = vsel %vm578, %v568, 2102212464
        %v581 = vsel %vm577, %v565, %v580
        %v582 = vsel %vm576, %v579, %v581
        %v583 = vsel %vm575, %v562, %v565
        %v584 = vsel %vm578, %v571, 920167782
        %v585 = vsel %vm577, %v568, %v584
        %v586 = vsel %vm576, %v583, %v585
        %v587 = vsel %vm575, %v565, %v568
        %v588 = vsel %vm578, %v574, 1326507024
        %v589 = vsel %vm577, %v571, %v588
        %v590 = vsel %vm576, %v587, %v589
        %v591 = vshll.u32 %v551, 8
        %v592 = vmul.u32.u64.compose %v591, %v590
        %v593 = vextract.low.u32 %v592
        %v594 = vextract.high.u32 %v592
        %v595 = vmul.u32.u64.compose %v591, %v586
        %v596 = vextract.low.u32 %v595
        %v597 = vextract.high.u32 %v595
        %v598 = vmul.u32 %v591, %v582
        %v599 = vadd.s32 %v594, %v596
        %vm600 = vc.u32 %v594, %v596
        %v601 = vadd.s32 %v597, 1
        %v602 = vsel %vm600, %v601, %v597
        %v603 = vadd.s32 %v598, %v602
        %v604 = vadd.s32 %v603, 536870912
        %v605 = vshrl.u32 %v604, 30
        %v606 = vshll.u32 %v605, 30
        %v607 = vsub.s32 %v603, %v606
        %vm608 = vcmp.lt.s32.totalorder %v607, 0
        %v609 = vsub.s32 0, %v607
        %v610 = vsel %vm608, %v609, %v607
        %v611 = vclz %v610
        %v612 = vsub.s32 %v611, 2
        %vm613 = vcmp.gt.s32.totalorder 0, %v612
        %v614 = vsel %vm613, 0, %v612
        %v615 = vsub.s32 32, %v614
        %v616 = vshll.u32 %v607, %v614
        %v617 = vshrl.u32 %v599, %v615
        %v618 = vor.u32 %v616, %v617
        %v619 = vsub.s32 4294967266, %v614
        %v620 = vadd.s32 %v619, 127
        %v621 = vshll.u32 %v620, 23
        %v622 = vor.u32 4788187, %v621
        %v623 = vand.u32 2147483647, %v622
        %v625 = vcvt.s32.f32 %v618
        %v626 = vmul.f32 %v625, %v623
        %v627 = vxor.u32 %v626, 2147483648
        %v628 = vsel %vm545, %v627, %v626
        %v629 = vsub.s32 4, %v605
        %v630 = vsel %vm545, %v629, %v605
        %v631 = vsel %vm544, %v436, %v628
        %v632 = vsel %vm544, 0, %v630
        %v633 = vcosq.f32.pop %v631
        %v634 = vsinq.f32.pop %v631
        %vm635 = vweird.f32 %v436
        %v636 = vadd.s32 %v632, 3
        %v637 = vand.u32 %v636, 3
        %vm638 = vcmp.lt.s32.totalorder %v637, 2
        %vm639 = vcmp.eq.s32.totalorder %v637, 0
        %v640 = vxor.u32 %v634, 2147483648
        %v641 = vsel %vm639, %v633, %v640
        %vm642 = vcmp.eq.s32.totalorder %v637, 2
        %v643 = vxor.u32 %v633, 2147483648
        %v644 = vsel %vm642, %v643, %v634
        %v645 = vsel %vm638, %v641, %v644
        %v646 = vsel %vm635, nan, %v645
        %v647 = vand.u32 2147483647, %v437
        %vm648 = vcmp.le.f32.partialorder %v647, 0.7853982
        %vm649 = vcmp.lt.s32.totalorder %v437, 0
        %v650 = vand.u32 %v437, 2139095040
        %v651 = vshrl.u32 %v650, 23
        %v652 = vsub.s32 %v651, 127
        %v653 = vand.u32 2147483647, %v437
        %v654 = vand.u32 %v653, 8388607
        %v655 = vor.u32 %v654, 8388608
        %v656 = vsub.s32 0, %v655
        %v657 = vadd.s32 %v652, 1
        %vm658 = vcmp.gt.s32.totalorder %v657, 0
        %v659 = vsel %vm658, %v657, 0
        %v660 = vshrl.u32 %v659, 5
        %v661 = vand.u32 %v659, 31
        %v662 = vsub.s32 32, %v661
        %v663 = vshrl.u32 683565275, %v662
        %v664 = vshll.u32 683565275, %v661
        %v665 = vshrl.u32 2475754826, %v662
        %v666 = vor.u32 %v664, %v665
        %v667 = vshll.u32 2475754826, %v661
        %v668 = vshrl.u32 2131351028, %v662
        %v669 = vor.u32 %v667, %v668
        %v670 = vshll.u32 2131351028, %v661
        %v671 = vshrl.u32 2102212464, %v662
        %v672 = vor.u32 %v670, %v671
        %v673 = vshll.u32 2102212464, %v661
        %v674 = vshrl.u32 920167782, %v662
        %v675 = vor.u32 %v673, %v674
        %v676 = vshll.u32 920167782, %v661
        %v677 = vshrl.u32 1326507024, %v662
        %v678 = vor.u32 %v676, %v677
        %vm679 = vcmp.lt.s32.totalorder %v660, 1
        %vm680 = vcmp.lt.s32.totalorder %v660, 2
        %vm681 = vcmp.lt.s32.totalorder %v660, 3
        %vm682 = vcmp.lt.s32.totalorder %v660, 4
        %v683 = vsel %vm679, %v663, %v666
        %v684 = vsel %vm682, %v672, 2102212464
        %v685 = vsel %vm681, %v669, %v684
        %v686 = vsel %vm680, %v683, %v685
        %v687 = vsel %vm679, %v666, %v669
        %v688 = vsel %vm682, %v675, 920167782
        %v689 = vsel %vm681, %v672, %v688
        %v690 = vsel %vm680, %v687, %v689
        %v691 = vsel %vm679, %v669, %v672
        %v692 = vsel %vm682, %v678, 1326507024
        %v693 = vsel %vm681, %v675, %v692
        %v694 = vsel %vm680, %v691, %v693
        %v695 = vshll.u32 %v655, 8
        %v696 = vmul.u32.u64.compose %v695, %v694
        %v697 = vextract.low.u32 %v696
        %v698 = vextract.high.u32 %v696
        %v699 = vmul.u32.u64.compose %v695, %v690
        %v700 = vextract.low.u32 %v699
        %v701 = vextract.high.u32 %v699
        %v702 = vmul.u32 %v695, %v686
        %v703 = vadd.s32 %v698, %v700
        %vm704 = vc.u32 %v698, %v700
        %v705 = vadd.s32 %v701, 1
        %v706 = vsel %vm704, %v705, %v701
        %v707 = vadd.s32 %v702, %v706
        %v708 = vadd.s32 %v707, 536870912
        %v709 = vshrl.u32 %v708, 30
        %v710 = vshll.u32 %v709, 30
        %v711 = vsub.s32 %v707, %v710
        %vm712 = vcmp.lt.s32.totalorder %v711, 0
        %v713 = vsub.s32 0, %v711
        %v714 = vsel %vm712, %v713, %v711
        %v715 = vclz %v714
        %v716 = vsub.s32 %v715, 2
        %vm717 = vcmp.gt.s32.totalorder 0, %v716
        %v718 = vsel %vm717, 0, %v716
        %v719 = vsub.s32 32, %v718
        %v720 = vshll.u32 %v711, %v718
        %v721 = vshrl.u32 %v703, %v719
        %v722 = vor.u32 %v720, %v721
        %v723 = vsub.s32 4294967266, %v718
        %v724 = vadd.s32 %v723, 127
        %v725 = vshll.u32 %v724, 23
        %v726 = vor.u32 4788187, %v725
        %v727 = vand.u32 2147483647, %v726
        %v729 = vcvt.s32.f32 %v722
        %v730 = vmul.f32 %v729, %v727
        %v731 = vxor.u32 %v730, 2147483648
        %v732 = vsel %vm649, %v731, %v730
        %v733 = vsub.s32 4, %v709
        %v734 = vsel %vm649, %v733, %v709
        %v735 = vsel %vm648, %v437, %v732
        %v736 = vsel %vm648, 0, %v734
        %v737 = vcosq.f32.pop %v735
        %v738 = vsinq.f32.pop %v735
        %vm739 = vweird.f32 %v437
        %v740 = vadd.s32 %v736, 3
        %v741 = vand.u32 %v740, 3
        %vm742 = vcmp.lt.s32.totalorder %v741, 2
        %vm743 = vcmp.eq.s32.totalorder %v741, 0
        %v744 = vxor.u32 %v738, 2147483648
        %v745 = vsel %vm743, %v737, %v744
        %vm746 = vcmp.eq.s32.totalorder %v741, 2
        %v747 = vxor.u32 %v737, 2147483648
        %v748 = vsel %vm746, %v747, %v738
        %v749 = vsel %vm742, %v745, %v748
        %v750 = vsel %vm739, nan, %v749
        %v751 = vand.u32 2147483647, %v438
        %vm752 = vcmp.le.f32.partialorder %v751, 0.7853982
        %vm753 = vcmp.lt.s32.totalorder %v438, 0
        %v754 = vand.u32 %v438, 2139095040
        %v755 = vshrl.u32 %v754, 23
        %v756 = vsub.s32 %v755, 127
        %v757 = vand.u32 2147483647, %v438
        %v758 = vand.u32 %v757, 8388607
        %v759 = vor.u32 %v758, 8388608
        %v760 = vsub.s32 0, %v759
        %v761 = vadd.s32 %v756, 1
        %vm762 = vcmp.gt.s32.totalorder %v761, 0
        %v763 = vsel %vm762, %v761, 0
        %v764 = vshrl.u32 %v763, 5
        %v765 = vand.u32 %v763, 31
        %v766 = vsub.s32 32, %v765
        %v767 = vshrl.u32 683565275, %v766
        %v768 = vshll.u32 683565275, %v765
        %v769 = vshrl.u32 2475754826, %v766
        %v770 = vor.u32 %v768, %v769
        %v771 = vshll.u32 2475754826, %v765
        %v772 = vshrl.u32 2131351028, %v766
        %v773 = vor.u32 %v771, %v772
        %v774 = vshll.u32 2131351028, %v765
        %v775 = vshrl.u32 2102212464, %v766
        %v776 = vor.u32 %v774, %v775
        %v777 = vshll.u32 2102212464, %v765
        %v778 = vshrl.u32 920167782, %v766
        %v779 = vor.u32 %v777, %v778
        %v780 = vshll.u32 920167782, %v765
        %v781 = vshrl.u32 1326507024, %v766
        %v782 = vor.u32 %v780, %v781
        %vm783 = vcmp.lt.s32.totalorder %v764, 1
        %vm784 = vcmp.lt.s32.totalorder %v764, 2
        %vm785 = vcmp.lt.s32.totalorder %v764, 3
        %vm786 = vcmp.lt.s32.totalorder %v764, 4
        %v787 = vsel %vm783, %v767, %v770
        %v788 = vsel %vm786, %v776, 2102212464
        %v789 = vsel %vm785, %v773, %v788
        %v790 = vsel %vm784, %v787, %v789
        %v791 = vsel %vm783, %v770, %v773
        %v792 = vsel %vm786, %v779, 920167782
        %v793 = vsel %vm785, %v776, %v792
        %v794 = vsel %vm784, %v791, %v793
        %v795 = vsel %vm783, %v773, %v776
        %v796 = vsel %vm786, %v782, 1326507024
        %v797 = vsel %vm785, %v779, %v796
        %v798 = vsel %vm784, %v795, %v797
        %v799 = vshll.u32 %v759, 8
        %v800 = vmul.u32.u64.compose %v799, %v798
        %v801 = vextract.low.u32 %v800
        %v802 = vextract.high.u32 %v800
        %v803 = vmul.u32.u64.compose %v799, %v794
        %v804 = vextract.low.u32 %v803
        %v805 = vextract.high.u32 %v803
        %v806 = vmul.u32 %v799, %v790
        %v807 = vadd.s32 %v802, %v804
        %vm808 = vc.u32 %v802, %v804
        %v809 = vadd.s32 %v805, 1
        %v810 = vsel %vm808, %v809, %v805
        %v811 = vadd.s32 %v806, %v810
        %v812 = vadd.s32 %v811, 536870912
        %v813 = vshrl.u32 %v812, 30
        %v814 = vshll.u32 %v813, 30
        %v815 = vsub.s32 %v811, %v814
        %vm816 = vcmp.lt.s32.totalorder %v815, 0
        %v817 = vsub.s32 0, %v815
        %v818 = vsel %vm816, %v817, %v815
        %v819 = vclz %v818
        %v820 = vsub.s32 %v819, 2
        %vm821 = vcmp.gt.s32.totalorder 0, %v820
        %v822 = vsel %vm821, 0, %v820
        %v823 = vsub.s32 32, %v822
        %v824 = vshll.u32 %v815, %v822
        %v825 = vshrl.u32 %v807, %v823
        %v826 = vor.u32 %v824, %v825
        %v827 = vsub.s32 4294967266, %v822
        %v828 = vadd.s32 %v827, 127
        %v829 = vshll.u32 %v828, 23
        %v830 = vor.u32 4788187, %v829
        %v831 = vand.u32 2147483647, %v830
        %v833 = vcvt.s32.f32 %v826
        %v834 = vmul.f32 %v833, %v831
        %v835 = vxor.u32 %v834, 2147483648
        %v836 = vsel %vm753, %v835, %v834
        %v837 = vsub.s32 4, %v813
        %v838 = vsel %vm753, %v837, %v813
        %v839 = vsel %vm752, %v438, %v836
        %v840 = vsel %vm752, 0, %v838
        %v841 = vcosq.f32.pop %v839
        %v842 = vsinq.f32.pop %v839
        %vm843 = vweird.f32 %v438
        %v844 = vadd.s32 %v840, 3
        %v845 = vand.u32 %v844, 3
        %vm846 = vcmp.lt.s32.totalorder %v845, 2
        %vm847 = vcmp.eq.s32.totalorder %v845, 0
        %v848 = vxor.u32 %v842, 2147483648
        %v849 = vsel %vm847, %v841, %v848
        %vm850 = vcmp.eq.s32.totalorder %v845, 2
        %v851 = vxor.u32 %v841, 2147483648
        %v852 = vsel %vm850, %v851, %v842
        %v853 = vsel %vm846, %v849, %v852
        %v854 = vsel %vm843, nan, %v853
        %v855 = vld [vmem:[#allocation7] sm:$0xf]
        %v857 = vlaneseq
        %v858 = vshrl.u32 %v857, 7
        %v859 = vsub.s32 0, %v858
        %v860 = vrot.slane %v855, %v859
        %v861 = vlaneseq
        %v862 = vshrl.u32 %v861, 7
        %v863 = vsub.s32 1, %v862
        %v864 = vrot.slane %v855, %v863
        %v865 = vlaneseq
        %v866 = vshrl.u32 %v865, 7
        %v867 = vsub.s32 2, %v866
        %v868 = vrot.slane %v855, %v867
        %v869 = vlaneseq
        %v870 = vshrl.u32 %v869, 7
        %v871 = vsub.s32 3, %v870
        %v872 = vrot.slane %v855, %v871
        %vm877 = vcmask 523264
        %v879 = vsel %vm877, %v321, 0
        %881 = vmatprep.subr.mxu0 0.0
        %882 = vmatpush1.msra.mxu0 0.0
        %883 = vmatprep.subr.mxu0 0.0
        %884 = vmatpush1.msra.mxu0 0.0
        %885 = vmatprep.subr.mxu0 0.0
        %886 = vmatpush1.msra.mxu0 0.0
        %887 = vmatprep.subr.mxu0 0.0
        %888 = vmatpush1.msra.mxu0 0.0
        %889 = vmatprep.subr.mxu0 0.0
        %890 = vmatpush1.msra.mxu0 0.0
        %891 = vmatprep.subr.mxu0 0.0
        %892 = vmatpush1.msra.mxu0 0.0
        %893 = vmatprep.subr.mxu0 0.0
        %894 = vmatpush1.msra.mxu0 0.0
        %895 = vmatprep.subr.mxu0 0.0
        %896 = vmatpush1.msra.mxu0 0.0
        %897 = vmatprep.subr.mxu0 %v351
        %898 = vmatpush1.msra.mxu0 %v350
        %899 = vmatprep.subr.mxu0 %v347
        %900 = vmatpush1.msra.mxu0 %v346
        %901 = vmatprep.subr.mxu0 %v343
        %902 = vmatpush1.msra.mxu0 %v342
        %903 = vmatprep.subr.mxu0 %v339
        %904 = vmatpush1.msra.mxu0 %v338
        %905 = vmatprep.subr.mxu0 %v335
        %906 = vmatpush1.msra.mxu0 %v334
        %907 = vmatprep.subr.mxu0 %v331
        %908 = vmatpush1.msra.mxu0 %v330
        %909 = vmatprep.subr.mxu0 %v327
        %910 = vmatpush1.msra.mxu0 %v326
        %911 = vmatprep.subr.mxu0 %v323
        %912 = vmatpush1.msra.mxu0 %v322
        %913 = vmatprep.subr.mxu0 0.0
        %914 = vmatpush2.msra.mxu0 0.0
        %915 = vmatprep.subr.mxu0 0.0
        %916 = vmatpush2.msra.mxu0 0.0
        %917 = vmatprep.subr.mxu0 0.0
        %918 = vmatpush2.msra.mxu0 0.0
        %919 = vmatprep.subr.mxu0 0.0
        %920 = vmatpush2.msra.mxu0 0.0
        %921 = vmatprep.subr.mxu0 0.0
        %922 = vmatpush2.msra.mxu0 0.0
        %923 = vmatprep.subr.mxu0 0.0
        %924 = vmatpush2.msra.mxu0 0.0
        %925 = vmatprep.subr.mxu0 0.0
        %926 = vmatpush2.msra.mxu0 0.0
        %927 = vmatprep.subr.mxu0 0.0
        %928 = vmatpush2.msra.mxu0 0.0
        %929 = vmatprep.subr.mxu0 0.0
        %930 = vmatpush2.msra.mxu0 0.0
        %931 = vmatprep.subr.mxu0 0.0
        %932 = vmatpush2.msra.mxu0 0.0
        %933 = vmatprep.subr.mxu0 0.0
        %934 = vmatpush2.msra.mxu0 0.0
        %935 = vmatprep.subr.mxu0 0.0
        %936 = vmatpush2.msra.mxu0 0.0
        %937 = vmatprep.subr.mxu0 0.0
        %938 = vmatpush2.msra.mxu0 0.0
        %939 = vmatprep.subr.mxu0 0.0
        %940 = vmatpush2.msra.mxu0 0.0
        %941 = vmatprep.subr.mxu0 0.0
        %942 = vmatpush2.msra.mxu0 0.0
        %943 = vmatprep.subr.mxu0 0.0
        %944 = vmatpush2.msra.mxu0 0.0
        %945 = vmatprep.mubr.f32.mxu0 0.0
        %946 = vmatmul.mubr.f32.gmra.mxu0 %v879
        %v947 = vpop.f32.mrf.mxu0
        %v948 = vadd.f32 %v860, %v947
        %v949 = vpop.f32.mrf.mxu0
        %v950 = vadd.f32 %v864, %v949
        %951 = vdwg.mxu0
        %952 = vmatprep.subr.mxu0 0.0
        %953 = vmatpush1.msra.mxu0 0.0
        %954 = vmatprep.subr.mxu0 0.0
        %955 = vmatpush1.msra.mxu0 0.0
        %956 = vmatprep.subr.mxu0 0.0
        %957 = vmatpush1.msra.mxu0 0.0
        %958 = vmatprep.subr.mxu0 0.0
        %959 = vmatpush1.msra.mxu0 0.0
        %960 = vmatprep.subr.mxu0 0.0
        %961 = vmatpush1.msra.mxu0 0.0
        %962 = vmatprep.subr.mxu0 0.0
        %963 = vmatpush1.msra.mxu0 0.0
        %964 = vmatprep.subr.mxu0 0.0
        %965 = vmatpush1.msra.mxu0 0.0
        %966 = vmatprep.subr.mxu0 0.0
        %967 = vmatpush1.msra.mxu0 0.0
        %968 = vmatprep.subr.mxu0 %v353
        %969 = vmatpush1.msra.mxu0 %v352
        %970 = vmatprep.subr.mxu0 %v349
        %971 = vmatpush1.msra.mxu0 %v348
        %972 = vmatprep.subr.mxu0 %v345
        %973 = vmatpush1.msra.mxu0 %v344
        %974 = vmatprep.subr.mxu0 %v341
        %975 = vmatpush1.msra.mxu0 %v340
        %976 = vmatprep.subr.mxu0 %v337
        %977 = vmatpush1.msra.mxu0 %v336
        %978 = vmatprep.subr.mxu0 %v333
        %979 = vmatpush1.msra.mxu0 %v332
        %980 = vmatprep.subr.mxu0 %v329
        %981 = vmatpush1.msra.mxu0 %v328
        %982 = vmatprep.subr.mxu0 %v325
        %983 = vmatpush1.msra.mxu0 %v324
        %984 = vmatprep.subr.mxu0 0.0
        %985 = vmatpush2.msra.mxu0 0.0
        %986 = vmatprep.subr.mxu0 0.0
        %987 = vmatpush2.msra.mxu0 0.0
        %988 = vmatprep.subr.mxu0 0.0
        %989 = vmatpush2.msra.mxu0 0.0
        %990 = vmatprep.subr.mxu0 0.0
        %991 = vmatpush2.msra.mxu0 0.0
        %992 = vmatprep.subr.mxu0 0.0
        %993 = vmatpush2.msra.mxu0 0.0
        %994 = vmatprep.subr.mxu0 0.0
        %995 = vmatpush2.msra.mxu0 0.0
        %996 = vmatprep.subr.mxu0 0.0
        %997 = vmatpush2.msra.mxu0 0.0
        %998 = vmatprep.subr.mxu0 0.0
        %999 = vmatpush2.msra.mxu0 0.0
        %1000 = vmatprep.subr.mxu0 0.0
        %1001 = vmatpush2.msra.mxu0 0.0
        %1002 = vmatprep.subr.mxu0 0.0
        %1003 = vmatpush2.msra.mxu0 0.0
        %1004 = vmatprep.subr.mxu0 0.0
        %1005 = vmatpush2.msra.mxu0 0.0
        %1006 = vmatprep.subr.mxu0 0.0
        %1007 = vmatpush2.msra.mxu0 0.0
        %1008 = vmatprep.subr.mxu0 0.0
        %1009 = vmatpush2.msra.mxu0 0.0
        %1010 = vmatprep.subr.mxu0 0.0
        %1011 = vmatpush2.msra.mxu0 0.0
        %1012 = vmatprep.subr.mxu0 0.0
        %1013 = vmatpush2.msra.mxu0 0.0
        %1014 = vmatprep.subr.mxu0 0.0
        %1015 = vmatpush2.msra.mxu0 0.0
        %1016 = vmatprep.mubr.f32.mxu0 0.0
        %1017 = vmatmul.mubr.f32.gmra.mxu0 %v879
        %v1018 = vpop.f32.mrf.mxu0
        %v1019 = vadd.f32 %v868, %v1018
        %v1020 = vpop.f32.mrf.mxu0
        %v1021 = vadd.f32 %v872, %v1020
        %1022 = vdwg.mxu0
        %v1023 = vadd.f32 %v948, %v542
        %v1024 = vadd.f32 %v950, %v646
        %v1025 = vadd.f32 %v1019, %v750
        %v1026 = vadd.f32 %v1021, %v854
        %v1031 = vcombine.low %v1023, %v1024
        %v1032 = vcombine.low %v1025, %v1026
        %v1034 = vunpack.c.l.s4 1966171168
        %v1035 = vunpack.c.0.s8 %v1034
        %v1036 = vlaneseq
        %v1037 = vshrl.u32 %v1036, 7
        %v1038 = vsub.s32 %v1035, %v1037
        %v1039 = vrot.slane %v1031, %v1038
        %v1041 = vunpack.c.l.s4 1966171168
        %v1042 = vunpack.c.0.s8 %v1041
        %v1043 = vlaneseq
        %v1044 = vshrl.u32 %v1043, 7
        %v1045 = vsub.s32 %v1042, %v1044
        %v1046 = vrot.slane %v1032, %v1045
        %v1047 = vcombine.low %v1039, %v1046
        %v1049 = vunpack.c.l.s4 1966171168
        %v1050 = vunpack.c.0.s8 %v1049
        %v1051 = vlaneseq
        %v1052 = vshrl.u32 %v1051, 7
        %v1053 = vsub.s32 %v1050, %v1052
        %v1054 = vrot.slane %v1047, %v1053
        %v1056 = vlaneseq
        %vm1057 = vcmp.ge.s32.totalorder %v1056, 0
        %vm1058 = vcmp.lt.s32.totalorder %v1056, 512
        %vm1059 = vmand %vm1057, %vm1058
        %1060 = vst.msk [vmem:[%s320] sm:$0xf] %vm1059, %v1054
        %s1061 = sand.u32 %s180, 1
        %s1062 = scalar_lea.sflag [#allocation4], %s1061
        %s1063 = sand.u32 %s180, 1
        %s1064 = smul.addr %s1063, 4
        %s1065 = scalar_lea.vmem [#allocation10], %s1064
        // Predicated region
        $region61: #{tpu_custom_call.1} parent=43 // pred_check
          %p1066 = pneg %p190
        $region62: #{tpu_custom_call.1} parent=43 // pred_check_branch
          %1068 = sbr.rel (%p1066) target = $region64
        $region63: #{tpu_custom_call.1} parent=43 // pred_region
          %s1070 = ssub.s32 64, 64
          %1071 = vsyncadd %s1062, %s1070
          %s1072 = smul.addr %s30, 4
          %s1073 = smul.addr %s29, 4
          %s1074 = sadd.s32 %s1072, %s1073
          %s1075 = smul.addr %s1074, 16
          %s1076 = scalar_lea.hbm %s6, %s1075
          %s1078 = sshll.u32 %s1065, 4
          %s1079 = int_to_ptr.vmem [resolvable:$true] %s1078
          %1081 = dma.vmem_to_hbm [thread:$0]  %s1079, 64, %s1076, %s1062
        $region64: #{tpu_custom_call.1} parent=43 // pred_fallthru
          _
      $region44: #{tpu_custom_call.1} parent=5 // pred_fallthru
        _
      %p1082 = scmp.le.s32.totalorder 2, %s20
      // Predicated region
      $region65: #{tpu_custom_call.1} parent=5 // pred_check
        %p1083 = pneg %p1082
      $region66: #{tpu_custom_call.1} parent=5 // pred_check_branch
        %1085 = sbr.rel (%p1083) target = $region68
      $region67: #{tpu_custom_call.1} parent=5 // pred_region
        %s1086 = ssub.s32 %s20, 2
        // Predicated region
        $region69: #{tpu_custom_call.1} parent=67 // pred_check
          %p1087 = pneg %p196
        $region70: #{tpu_custom_call.1} parent=67 // pred_check_branch
          %1089 = sbr.rel (%p1087) target = $region72
        $region71: #{tpu_custom_call.1} parent=67 // pred_region
          %s1090 = sand.u32 %s181, 1
          %s1091 = scalar_lea.sflag [#allocation4], %s1090
          %s1092 = sand.u32 %s181, 1
          %s1093 = smul.addr %s1092, 4
          %s1094 = scalar_lea.vmem [#allocation10], %s1093
          %1095 = dma.done %s1091, 64
        $region72: #{tpu_custom_call.1} parent=67 // pred_fallthru
          _
      $region68: #{tpu_custom_call.1} parent=5 // pred_fallthru
        _
    $region6: #{tpu_custom_call.1} parent=1 // loop_footer
      %s24 = sadd.s32 1, %s20
    $region7: #{tpu_custom_call.1} parent=1 // loop_footer_branch
      %19 = sbr.rel target = $region3
    $region8: #{tpu_custom_call.1} parent=1 // loop_exit
      _
    %1096 = vsyncpa [#allocation3], 1
    %s1097 = scalar_lea.sflag [#allocation3], 1
    %1098 = vsyncpa %s1097, 1
    %1099 = vsyncpa [#allocation6], 1
    %1100 = vsyncpa [#allocation9], 1
    %1101 = vsyncpa [#allocation4], 1
    %s1102 = scalar_lea.sflag [#allocation4], 1
    %1103 = vsyncpa %s1102, 1

</llo_original>
